<compile_context>
chip_gen: v7x
topology: tpu7x:2x2x1
jax: 0.10.0
libtpu: 0.0.40
codegen_flags: <defaults>
</compile_context>

<pallas_src>
import math
import numpy as np

import jax
import jax.numpy as jnp
from jax.experimental import pallas as pl
from jax.experimental.pallas import tpu as pltpu

POOL = 4          # module default pool_size
BN_EPS = 1e-5     # nn.BatchNorm1d default eps


def _residual_gru_kernel(x_ref, h_ref, w_x_ref, w_h_ref, sel_ref, w_exp_ref, b_exp_ref,
                         out_ref):
    f32, bf16 = jnp.float32, jnp.bfloat16
    x = x_ref[...]                      # (Bb, I)  f32
    h = h_ref[...]                      # (Bb, H)  f32
    H = h.shape[-1]
    Hp = w_exp_ref.shape[0]             # H // POOL

    # ---- two fused, lane-dense MXU matmuls (bf16 operands, f32 accumulate) ----
    xw = jnp.dot(x.astype(bf16), w_x_ref[...], preferred_element_type=f32)   # (Bb, 4H)
    hw = jnp.dot(h.astype(bf16), w_h_ref[...], preferred_element_type=f32)   # (Bb, 3H)

    # ---- GRUCell (PyTorch gate order r, z, n; zero biases folded out); f32 elementwise ----
    r = jax.nn.sigmoid(xw[:, 0:H] + hw[:, 0:H])
    z = jax.nn.sigmoid(xw[:, H:2 * H] + hw[:, H:2 * H])
    n = jnp.tanh(xw[:, 2 * H:3 * H] + r * hw[:, 2 * H:3 * H])
    h_new = (1.0 - z) * n + z * h

    # ---- residual Linear(x) (4th slice of the fused x matmul); BN scale is folded into
    #      w_exp downstream; ReLU; Dropout = identity (eval) ----
    hid = jnp.maximum(h_new + xw[:, 3 * H:4 * H], 0.0)

    # ---- MaxPool1d(POOL): one one-hot selection matmul + max over its 4 column groups ----
    p4 = jnp.dot(hid.astype(bf16), sel_ref[...], preferred_element_type=f32)  # (Bb, POOL*Hp)
    pooled = p4[:, 0:Hp]
    for o in range(1, POOL):
        pooled = jnp.maximum(pooled, p4[:, o * Hp:(o + 1) * Hp])

    # ---- expand (LazyLinear, BN scale pre-folded into weight) + tanh ----
    out_ref[...] = jnp.tanh(
        jnp.dot(pooled.astype(bf16), w_exp_ref[...], preferred_element_type=f32)
        + b_exp_ref[...])


def residual_gru_cell(x, hidden, kparams, *, block_b=8):
    """Batch-tiled wrapper: grid over batch blocks, weights resident via constant index_map."""
    B, I = x.shape
    H = hidden.shape[1]
    Hp = kparams["w_exp"].shape[0]
    assert B % block_b == 0

    def row_spec(d):
        return pl.BlockSpec((block_b, d), lambda i: (i, 0))

    def const_spec(shape):
        return pl.BlockSpec(shape, lambda i: (0, 0))

    return pl.pallas_call(
        _residual_gru_kernel,
        out_shape=jax.ShapeDtypeStruct((B, H), jnp.float32),
        grid=(B // block_b,),
        in_specs=[
            row_spec(I),                     # x
            row_spec(H),                     # hidden
            const_spec((I, 4 * H)),          # fused x-side weights   [w_ir|w_iz|w_in|w_lin]
            const_spec((H, 3 * H)),          # fused h-side weights   [w_hr|w_hz|w_hn]
            const_spec((H, POOL * Hp)),      # max-pool one-hot selection
            const_spec((Hp, H)),             # expand weight (BN scale folded in)
            const_spec((1, H)),              # expand bias
        ],
        out_specs=row_spec(H),
        compiler_params=pltpu.CompilerParams(
            dimension_semantics=("parallel",)),
    )(x, hidden, kparams["w_x"], kparams["w_h"], kparams["sel"],
      kparams["w_exp"], kparams["b_exp"])


def make_params(key, input_size, hidden_size, pool_size=POOL):
    """Deterministic init matching the PyTorch module; returns (module_f32, kernel_fused)."""
    I, H = input_size, hidden_size
    Hp = H // pool_size
    k = jax.random.split(key, 5)

    # GRUCell weights: kaiming_uniform_(nonlinearity='tanh') -> gain = 5/3
    gain = 5.0 / 3.0
    b_ih = gain * math.sqrt(3.0 / I)
    b_hh = gain * math.sqrt(3.0 / H)
    W_ih = jax.random.uniform(k[0], (3 * H, I), jnp.float32, -b_ih, b_ih)   # rows: [r; z; n]
    W_hh = jax.random.uniform(k[1], (3 * H, H), jnp.float32, -b_hh, b_hh)

    # residual Linear: xavier_uniform_ weight, zero bias
    xav = math.sqrt(6.0 / (I + H))
    W_lin = jax.random.uniform(k[2], (H, I), jnp.float32, -xav, xav)

    # expand (LazyLinear): default init, fan_in = H // pool
    b_exp_bound = 1.0 / math.sqrt(Hp)
    W_exp = jax.random.uniform(k[3], (H, Hp), jnp.float32, -b_exp_bound, b_exp_bound)
    b_exp = jax.random.uniform(k[4], (H,), jnp.float32, -b_exp_bound, b_exp_bound)

    module = {
        "w_ir": W_ih[:H].T, "w_iz": W_ih[H:2 * H].T, "w_in": W_ih[2 * H:].T,
        "w_hr": W_hh[:H].T, "w_hz": W_hh[H:2 * H].T, "w_hn": W_hh[2 * H:].T,
        "w_lin": W_lin.T,                    # (I, H)
        "w_exp": W_exp.T,                    # (Hp, H)
        "b_exp": b_exp.reshape(1, H),        # (1, H)
    }

    # ---- fused / folded kernel parameters ----
    w_x = jnp.concatenate(
        [module["w_ir"], module["w_iz"], module["w_in"], module["w_lin"]], axis=1)  # (I, 4H)
    w_h = jnp.concatenate(
        [module["w_hr"], module["w_hz"], module["w_hn"]], axis=1)                   # (H, 3H)

    # one-hot selection: column o*Hp + kk picks hid[:, pool*kk + o]
    sel_np = np.zeros((H, pool_size * Hp), np.float32)
    for o in range(pool_size):
        for kk in range(Hp):
            sel_np[pool_size * kk + o, o * Hp + kk] = 1.0

    bn_scale = 1.0 / math.sqrt(1.0 + BN_EPS)   # eval-mode BatchNorm, folded into expand weight

    kernel = {
        "w_x": w_x.astype(jnp.bfloat16),
        "w_h": w_h.astype(jnp.bfloat16),
        "sel": jnp.asarray(sel_np, jnp.bfloat16),               # 0/1 exact in bf16
        "w_exp": (bn_scale * module["w_exp"]).astype(jnp.bfloat16),
        "b_exp": module["b_exp"],                               # f32
    }
    return module, kernel


def reference_f32(x, h, mp):
    """Pure-JAX, full-f32, eval-mode reference faithful to the PyTorch module."""
    r = jax.nn.sigmoid(x @ mp["w_ir"] + h @ mp["w_hr"])
    z = jax.nn.sigmoid(x @ mp["w_iz"] + h @ mp["w_hz"])
    n = jnp.tanh(x @ mp["w_in"] + r * (h @ mp["w_hn"]))
    h_new = (1.0 - z) * n + z * h
    hid = h_new + x @ mp["w_lin"]
    hid = hid * (1.0 / math.sqrt(1.0 + BN_EPS))
    hid = jnp.maximum(hid, 0.0)
    B, H = hid.shape
    pooled = jnp.max(hid.reshape(B, H // POOL, POOL), axis=-1)
    return jnp.tanh(pooled @ mp["w_exp"] + mp["b_exp"]).astype(jnp.float32)


def reference_bf16(x, h, kp):
    """Pure-JAX emulation of exactly the math the kernel performs (bf16 MXU operands)."""
    f32, bf16 = jnp.float32, jnp.bfloat16
    H = kp["w_h"].shape[0]
    Hp = kp["w_exp"].shape[0]
    xw = jnp.dot(x.astype(bf16), kp["w_x"], preferred_element_type=f32)
    hw = jnp.dot(h.astype(bf16), kp["w_h"], preferred_element_type=f32)
    r = jax.nn.sigmoid(xw[:, 0:H] + hw[:, 0:H])
    z = jax.nn.sigmoid(xw[:, H:2 * H] + hw[:, H:2 * H])
    n = jnp.tanh(xw[:, 2 * H:3 * H] + r * hw[:, 2 * H:3 * H])
    h_new = (1.0 - z) * n + z * h
    hid = jnp.maximum(h_new + xw[:, 3 * H:4 * H], 0.0)
    p4 = jnp.dot(hid.astype(bf16), kp["sel"], preferred_element_type=f32)
    pooled = p4[:, 0:Hp]
    for o in range(1, POOL):
        pooled = jnp.maximum(pooled, p4[:, o * Hp:(o + 1) * Hp])
    return jnp.tanh(jnp.dot(pooled.astype(bf16), kp["w_exp"], preferred_element_type=f32)
                    + kp["b_exp"]).astype(f32)


if __name__ == "__main__":
    B, INPUT_SIZE, HIDDEN_SIZE = 16, 32, 32     # 2 batch blocks of 8 -> "parallel" grid

    key = jax.random.PRNGKey(0)
    k_x, k_h, k_p = jax.random.split(key, 3)
    x = jax.random.normal(k_x, (B, INPUT_SIZE), jnp.float32)
    hidden = jax.random.normal(k_h, (B, HIDDEN_SIZE), jnp.float32)
    module_params, kernel_params = make_params(k_p, INPUT_SIZE, HIDDEN_SIZE)

    out = jax.block_until_ready(residual_gru_cell(x, hidden, kernel_params))

    assert out.shape == (B, HIDDEN_SIZE) and out.dtype == jnp.float32

    # 1) kernel matches its own (bf16-operand) math tightly
    ref_exact = reference_bf16(x, hidden, kernel_params)
    assert jnp.allclose(out, ref_exact, atol=1e-3, rtol=1e-3), "mismatch vs bf16-emulated reference"

    # 2) kernel stays close to the full-f32 PyTorch-faithful eval forward
    #    (tolerance reflects bf16 matmul-operand quantization)
    ref_module = reference_f32(x, hidden, module_params)
    assert jnp.allclose(out, ref_module, atol=5e-2, rtol=5e-2), "mismatch vs f32 module reference"

    print("KERNEL_OK")
</pallas_src>

<mosaic_0001>
module attributes {stable_mosaic.version = 11 : i64} {
  func.func @_residual_gru_kernel(%arg0: i32, %arg1: memref<8x32xf32, #tpu.memory_space<vmem>>, %arg2: memref<8x32xf32, #tpu.memory_space<vmem>>, %arg3: memref<32x128xbf16, #tpu.memory_space<vmem>>, %arg4: memref<32x96xbf16, #tpu.memory_space<vmem>>, %arg5: memref<32x32xbf16, #tpu.memory_space<vmem>>, %arg6: memref<8x32xbf16, #tpu.memory_space<vmem>>, %arg7: memref<1x32xf32, #tpu.memory_space<vmem>>, %arg8: memref<8x32xf32, #tpu.memory_space<vmem>>) attributes {dimension_semantics = [#tpu.dimension_semantics<parallel>], iteration_bounds = array<i64: 2>, scalar_prefetch = 0 : i64, scratch_operands = 0 : i64, tpu.core_type = #tpu.core_type<tc>, window_params = [{transform_indices = @transform_0, window_bounds = array<i64: 8, 32>}, {transform_indices = @transform_1, window_bounds = array<i64: 8, 32>}, {pipeline_mode = #tpu.pipeline_mode<synchronous>, transform_indices = @transform_2, window_bounds = array<i64: 32, 128>}, {pipeline_mode = #tpu.pipeline_mode<synchronous>, transform_indices = @transform_3, window_bounds = array<i64: 32, 96>}, {pipeline_mode = #tpu.pipeline_mode<synchronous>, transform_indices = @transform_4, window_bounds = array<i64: 32, 32>}, {pipeline_mode = #tpu.pipeline_mode<synchronous>, transform_indices = @transform_5, window_bounds = array<i64: 8, 32>}, {pipeline_mode = #tpu.pipeline_mode<synchronous>, transform_indices = @transform_6, window_bounds = array<i64: 1, 32>}, {transform_indices = @transform_7, window_bounds = array<i64: 8, 32>}]} {
    %c0 = arith.constant 0 : index
    %c0_0 = arith.constant 0 : index
    %0 = vector.load %arg1[%c0, %c0_0] : memref<8x32xf32, #tpu.memory_space<vmem>>, vector<8x32xf32>
    %c0_1 = arith.constant 0 : index
    %c0_2 = arith.constant 0 : index
    %1 = vector.load %arg2[%c0_1, %c0_2] : memref<8x32xf32, #tpu.memory_space<vmem>>, vector<8x32xf32>
    %2 = arith.truncf %0 : vector<8x32xf32> to vector<8x32xbf16>
    %c0_3 = arith.constant 0 : index
    %c0_4 = arith.constant 0 : index
    %3 = vector.load %arg3[%c0_3, %c0_4] : memref<32x128xbf16, #tpu.memory_space<vmem>>, vector<32x128xbf16>
    %cst = arith.constant dense<0.000000e+00> : vector<8x128xf32>
    %4 = tpu.matmul %2, %3, %cst {dimension_numbers = #tpu.dot_dimension_numbers<[1], [0], [0], [1], [0, 0, 1, 1], [], []>} : vector<8x32xbf16>, vector<32x128xbf16>, vector<8x128xf32> -> vector<8x128xf32>
    %5 = arith.truncf %1 : vector<8x32xf32> to vector<8x32xbf16>
    %c0_5 = arith.constant 0 : index
    %c0_6 = arith.constant 0 : index
    %6 = vector.load %arg4[%c0_5, %c0_6] : memref<32x96xbf16, #tpu.memory_space<vmem>>, vector<32x96xbf16>
    %cst_7 = arith.constant dense<0.000000e+00> : vector<8x96xf32>
    %7 = tpu.matmul %5, %6, %cst_7 {dimension_numbers = #tpu.dot_dimension_numbers<[1], [0], [0], [1], [0, 0, 1, 1], [], []>} : vector<8x32xbf16>, vector<32x96xbf16>, vector<8x96xf32> -> vector<8x96xf32>
    %8 = vector.extract_strided_slice %4 {offsets = [0, 0], sizes = [8, 32], strides = [1, 1]} : vector<8x128xf32> to vector<8x32xf32>
    %9 = vector.extract_strided_slice %7 {offsets = [0, 0], sizes = [8, 32], strides = [1, 1]} : vector<8x96xf32> to vector<8x32xf32>
    %10 = arith.addf %8, %9 : vector<8x32xf32>
    %11 = arith.negf %10 : vector<8x32xf32>
    %12 = math.exp %11 : vector<8x32xf32>
    %cst_8 = arith.constant 1.000000e+00 : f32
    %13 = vector.broadcast %cst_8 : f32 to vector<8x32xf32>
    %14 = arith.addf %13, %12 : vector<8x32xf32>
    %15 = arith.divf %13, %14 : vector<8x32xf32>
    %16 = vector.extract_strided_slice %4 {offsets = [0, 32], sizes = [8, 32], strides = [1, 1]} : vector<8x128xf32> to vector<8x32xf32>
    %17 = vector.extract_strided_slice %7 {offsets = [0, 32], sizes = [8, 32], strides = [1, 1]} : vector<8x96xf32> to vector<8x32xf32>
    %18 = arith.addf %16, %17 : vector<8x32xf32>
    %19 = arith.negf %18 : vector<8x32xf32>
    %20 = math.exp %19 : vector<8x32xf32>
    %cst_9 = arith.constant 1.000000e+00 : f32
    %21 = vector.broadcast %cst_9 : f32 to vector<8x32xf32>
    %22 = arith.addf %21, %20 : vector<8x32xf32>
    %23 = arith.divf %21, %22 : vector<8x32xf32>
    %24 = vector.extract_strided_slice %4 {offsets = [0, 64], sizes = [8, 32], strides = [1, 1]} : vector<8x128xf32> to vector<8x32xf32>
    %25 = vector.extract_strided_slice %7 {offsets = [0, 64], sizes = [8, 32], strides = [1, 1]} : vector<8x96xf32> to vector<8x32xf32>
    %26 = arith.mulf %15, %25 : vector<8x32xf32>
    %27 = arith.addf %24, %26 : vector<8x32xf32>
    %28 = math.tanh %27 : vector<8x32xf32>
    %cst_10 = arith.constant 1.000000e+00 : f32
    %29 = vector.broadcast %cst_10 : f32 to vector<8x32xf32>
    %30 = arith.subf %29, %23 : vector<8x32xf32>
    %31 = arith.mulf %30, %28 : vector<8x32xf32>
    %32 = arith.mulf %23, %1 : vector<8x32xf32>
    %33 = arith.addf %31, %32 : vector<8x32xf32>
    %34 = vector.extract_strided_slice %4 {offsets = [0, 96], sizes = [8, 32], strides = [1, 1]} : vector<8x128xf32> to vector<8x32xf32>
    %35 = arith.addf %33, %34 : vector<8x32xf32>
    %cst_11 = arith.constant 0.000000e+00 : f32
    %36 = vector.broadcast %cst_11 : f32 to vector<8x32xf32>
    %37 = arith.maximumf %35, %36 : vector<8x32xf32>
    %38 = arith.truncf %37 : vector<8x32xf32> to vector<8x32xbf16>
    %c0_12 = arith.constant 0 : index
    %c0_13 = arith.constant 0 : index
    %39 = vector.load %arg5[%c0_12, %c0_13] : memref<32x32xbf16, #tpu.memory_space<vmem>>, vector<32x32xbf16>
    %cst_14 = arith.constant dense<0.000000e+00> : vector<8x32xf32>
    %40 = tpu.matmul %38, %39, %cst_14 {dimension_numbers = #tpu.dot_dimension_numbers<[1], [0], [0], [1], [0, 0, 1, 1], [], []>} : vector<8x32xbf16>, vector<32x32xbf16>, vector<8x32xf32> -> vector<8x32xf32>
    %41 = vector.extract_strided_slice %40 {offsets = [0, 0], sizes = [8, 8], strides = [1, 1]} : vector<8x32xf32> to vector<8x8xf32>
    %42 = vector.extract_strided_slice %40 {offsets = [0, 8], sizes = [8, 8], strides = [1, 1]} : vector<8x32xf32> to vector<8x8xf32>
    %43 = arith.maximumf %41, %42 : vector<8x8xf32>
    %44 = vector.extract_strided_slice %40 {offsets = [0, 16], sizes = [8, 8], strides = [1, 1]} : vector<8x32xf32> to vector<8x8xf32>
    %45 = arith.maximumf %43, %44 : vector<8x8xf32>
    %46 = vector.extract_strided_slice %40 {offsets = [0, 24], sizes = [8, 8], strides = [1, 1]} : vector<8x32xf32> to vector<8x8xf32>
    %47 = arith.maximumf %45, %46 : vector<8x8xf32>
    %48 = arith.truncf %47 : vector<8x8xf32> to vector<8x8xbf16>
    %c0_15 = arith.constant 0 : index
    %c0_16 = arith.constant 0 : index
    %49 = vector.load %arg6[%c0_15, %c0_16] : memref<8x32xbf16, #tpu.memory_space<vmem>>, vector<8x32xbf16>
    %cst_17 = arith.constant dense<0.000000e+00> : vector<8x32xf32>
    %50 = tpu.matmul %48, %49, %cst_17 {dimension_numbers = #tpu.dot_dimension_numbers<[1], [0], [0], [1], [0, 0, 1, 1], [], []>} : vector<8x8xbf16>, vector<8x32xbf16>, vector<8x32xf32> -> vector<8x32xf32>
    %c0_18 = arith.constant 0 : index
    %c0_19 = arith.constant 0 : index
    %51 = vector.load %arg7[%c0_18, %c0_19] : memref<1x32xf32, #tpu.memory_space<vmem>>, vector<1x32xf32>
    %52 = vector.broadcast %51 : vector<1x32xf32> to vector<8x32xf32>
    %53 = arith.addf %50, %52 : vector<8x32xf32>
    %54 = math.tanh %53 : vector<8x32xf32>
    %c0_20 = arith.constant 0 : index
    %c0_21 = arith.constant 0 : index
    %55 = vector.load %arg8[%c0_20, %c0_21] : memref<8x32xf32, #tpu.memory_space<vmem>>, vector<8x32xf32>
    tpu.vector_store %arg8[%c0_20, %c0_21], %54 {strides = array<i32>} : memref<8x32xf32, #tpu.memory_space<vmem>>, vector<8x32xf32>,
    return
  }
  func.func @transform_0(%arg0: i32) -> (i32, i32) {
    %c0_i32 = arith.constant 0 : i32
    %c0_i32_0 = arith.constant 0 : i32
    return %arg0, %c0_i32 : i32, i32
  }
  func.func @transform_1(%arg0: i32) -> (i32, i32) {
    %c0_i32 = arith.constant 0 : i32
    %c0_i32_0 = arith.constant 0 : i32
    return %arg0, %c0_i32 : i32, i32
  }
  func.func @transform_2(%arg0: i32) -> (i32, i32) {
    %c0_i32 = arith.constant 0 : i32
    %c0_i32_0 = arith.constant 0 : i32
    %c0_i32_1 = arith.constant 0 : i32
    return %c0_i32, %c0_i32_0 : i32, i32
  }
  func.func @transform_3(%arg0: i32) -> (i32, i32) {
    %c0_i32 = arith.constant 0 : i32
    %c0_i32_0 = arith.constant 0 : i32
    %c0_i32_1 = arith.constant 0 : i32
    return %c0_i32, %c0_i32_0 : i32, i32
  }
  func.func @transform_4(%arg0: i32) -> (i32, i32) {
    %c0_i32 = arith.constant 0 : i32
    %c0_i32_0 = arith.constant 0 : i32
    %c0_i32_1 = arith.constant 0 : i32
    return %c0_i32, %c0_i32_0 : i32, i32
  }
  func.func @transform_5(%arg0: i32) -> (i32, i32) {
    %c0_i32 = arith.constant 0 : i32
    %c0_i32_0 = arith.constant 0 : i32
    %c0_i32_1 = arith.constant 0 : i32
    return %c0_i32, %c0_i32_0 : i32, i32
  }
  func.func @transform_6(%arg0: i32) -> (i32, i32) {
    %c0_i32 = arith.constant 0 : i32
    %c0_i32_0 = arith.constant 0 : i32
    %c0_i32_1 = arith.constant 0 : i32
    return %c0_i32, %c0_i32_0 : i32, i32
  }
  func.func @transform_7(%arg0: i32) -> (i32, i32) {
    %c0_i32 = arith.constant 0 : i32
    %c0_i32_0 = arith.constant 0 : i32
    return %arg0, %c0_i32 : i32, i32
  }
}

</mosaic_0001>

<llo_original>
// kernel: tpu_custom_call.1
$region0: #{tpu_custom_call.1}
  #allocation0 [shape = 'u32[]', space=smem, size = 0x4, offset = 0x4, fixed_abs, tag = 'smem constant byte address 0x4 - core index']
  #allocation1 [shape = 'u32[144,128]{1,0:T(1,128)}', space=vmem, size = 0x12000, scoped, tag = 'internal scratch']
  %s0 = inlined_call_operand.hbm [shape: f32[16,32], index: 0, kind: input, shape index: {}]
  %s1 = inlined_call_operand.hbm [shape: f32[16,32], index: 1, kind: input, shape index: {}]
  %s2 = inlined_call_operand.hbm [shape: bf16[32,128], index: 2, kind: input, shape index: {}]
  %s3 = inlined_call_operand.hbm [shape: bf16[32,96], index: 3, kind: input, shape index: {}]
  %s4 = inlined_call_operand.hbm [shape: bf16[32,32], index: 4, kind: input, shape index: {}]
  %s5 = inlined_call_operand.vmem [shape: bf16[8,32], index: 5, kind: input, shape index: {}]
  %s6 = inlined_call_operand.vmem [shape: f32[1,32], index: 6, kind: input, shape index: {}]
  %s7 = inlined_call_operand.hbm [shape: f32[16,32], index: 7, kind: output, shape index: {}]
  %s8 = sld [smem:[#allocation0]]
  $region81: #{tpu_custom_call.1} parent=0
    _
  %s10 = ssub.s32 1, %s8
  %s11 = scalar_select 0, %s10, %s8
  $region1: #{tpu_custom_call.1} parent=0
    #allocation2 [shape = 'u8[8192]{0}', space=vmem, size = 0x2000, scoped, tag = 'input window, operand 0']
    #allocation3 [shape = 's32[2]{0}', space=sflag, size = 0x8, scoped, tag = 'scoped memory for tpu_custom_call.1']
    #allocation4 [shape = 's32[2]{0}', space=sflag, size = 0x8, scoped, tag = 'scoped memory for tpu_custom_call.1']
    #allocation5 [shape = 'u8[8192]{0}', space=vmem, size = 0x2000, scoped, tag = 'input window, operand 1']
    #allocation6 [shape = 's32[2]{0}', space=sflag, size = 0x8, scoped, tag = 'scoped memory for tpu_custom_call.1']
    #allocation7 [shape = 'u8[8192]{0}', space=vmem, size = 0x2000, scoped, tag = 'input window, operand 2, single buffered']
    #allocation8 [shape = 'u8[8192]{0}', space=vmem, size = 0x2000, scoped, tag = 'input window, operand 3, single buffered']
    #allocation9 [shape = 's32[1]{0}', space=sflag, size = 0x4, scoped, tag = 'scoped memory for tpu_custom_call.1']
    #allocation10 [shape = 'u8[8192]{0}', space=vmem, size = 0x2000, scoped, tag = 'input window, operand 4, single buffered']
    #allocation11 [shape = 'u8[8192]{0}', space=vmem, size = 0x2000, scoped, tag = 'output window, operand 0']
    %12 = vsyncpa [#allocation3], 0
    %s13 = scalar_lea.sflag [#allocation3], 1
    %14 = vsyncpa %s13, 0
    %15 = vsyncpa [#allocation6], 0
    %s16 = scalar_lea.sflag [#allocation6], 1
    %17 = vsyncpa %s16, 0
    %18 = vsyncpa [#allocation9], 0
    %19 = vsyncpa [#allocation4], 0
    %s20 = scalar_lea.sflag [#allocation4], 1
    %21 = vsyncpa %s20, 0
    loop: start=0, step=1, limit=4
    $region2: #{tpu_custom_call.1} parent=1 // loop_pre_header
      _
    $region3: #{tpu_custom_call.1} parent=1 // loop_header
      %s23 = sphi 0, %s27
      %p24 = scmp.ge.s32.totalorder %s23, 4
      %s33 = sphi 0, %s35
      %s36 = sphi 0, %s33
      %s37 = sphi 0, %s36
      %s53 = sphi 0, %s37
      %s59 = sphi 0, %s61
      %s62 = sphi 0, %s59
      %s63 = sphi 0, %s62
      %s79 = sphi 0, %s63
      %s83 = sphi 0, %s83
      %s85 = sphi 0, %s83
      %s86 = sphi 0, %s85
      %s100 = sphi 0, %s86
      %s104 = sphi 0, %s104
      %s106 = sphi 0, %s104
      %s107 = sphi 0, %s106
      %s121 = sphi 0, %s107
      %s125 = sphi 0, %s125
      %s127 = sphi 0, %s125
      %s128 = sphi 0, %s127
      %s142 = sphi 0, %s128
      %s146 = sphi 0, %s146
      %s148 = sphi 0, %s146
      %s149 = sphi 0, %s148
      %s163 = sphi 0, %s149
      %s167 = sphi 0, %s167
      %s169 = sphi 0, %s167
      %s170 = sphi 0, %s169
      %s184 = sphi 0, %s170
      %s190 = sphi 0, %s192
      %s193 = sphi 0, %s190
      %s194 = sphi 0, %s193
      %s210 = sphi 0, %s194
    $region4: #{tpu_custom_call.1} parent=1 // loop_header_branch
      %26 = sbr.rel (%p24) target = $region8
    $region5: #{tpu_custom_call.1} parent=1 // loop_body
      %s28 = ssub.s32 %s23, 1
      %s29 = ssub.s32 %s23, 2
      %s30 = sadd.s32 %s23, 1
      %s31 = ssub.s32 %s23, %s30
      %p32 = scmp.eq.s32.totalorder %s31, 0
      %s34 = sadd.s32 %s33, 1
      %s35 = scalar_select %p32, %s33, %s34
      %p38 = pneg %p32
      %p39 = scmp.eq.s32.totalorder %s23, 1
      %p40 = por %p38, %p39
      %p41 = scmp.ne.s32.totalorder %s33, %s36
      %p42 = scmp.eq.s32.totalorder %s23, 0
      %p43 = por %p41, %p42
      %p44 = scmp.ne.s32.totalorder %s33, %s36
      %p45 = scmp.eq.s32.totalorder %s28, 1
      %p46 = por %p44, %p45
      %p47 = scmp.ne.s32.totalorder %s36, %s37
      %p48 = scmp.eq.s32.totalorder %s28, 0
      %p49 = por %p47, %p48
      %p50 = scmp.ne.s32.totalorder %s36, %s37
      %p51 = scmp.eq.s32.totalorder %s29, 1
      %p52 = por %p50, %p51
      %p54 = scmp.ne.s32.totalorder %s37, %s53
      %p55 = scmp.eq.s32.totalorder %s29, 0
      %p56 = por %p54, %p55
      %s57 = ssub.s32 %s23, %s30
      %p58 = scmp.eq.s32.totalorder %s57, 0
      %s60 = sadd.s32 %s59, 1
      %s61 = scalar_select %p58, %s59, %s60
      %p64 = pneg %p58
      %p65 = scmp.eq.s32.totalorder %s23, 1
      %p66 = por %p64, %p65
      %p67 = scmp.ne.s32.totalorder %s59, %s62
      %p68 = scmp.eq.s32.totalorder %s23, 0
      %p69 = por %p67, %p68
      %p70 = scmp.ne.s32.totalorder %s59, %s62
      %p71 = scmp.eq.s32.totalorder %s28, 1
      %p72 = por %p70, %p71
      %p73 = scmp.ne.s32.totalorder %s62, %s63
      %p74 = scmp.eq.s32.totalorder %s28, 0
      %p75 = por %p73, %p74
      %p76 = scmp.ne.s32.totalorder %s62, %s63
      %p77 = scmp.eq.s32.totalorder %s29, 1
      %p78 = por %p76, %p77
      %p80 = scmp.ne.s32.totalorder %s63, %s79
      %p81 = scmp.eq.s32.totalorder %s29, 0
      %p82 = por %p80, %p81
      %s84 = sadd.s32 %s83, 1
      %p87 = scmp.eq.s32.totalorder %s23, 1
      %p88 = scmp.ne.s32.totalorder %s83, %s85
      %p89 = scmp.eq.s32.totalorder %s23, 0
      %p90 = por %p88, %p89
      %p91 = scmp.ne.s32.totalorder %s83, %s85
      %p92 = scmp.eq.s32.totalorder %s28, 1
      %p93 = por %p91, %p92
      %p94 = scmp.ne.s32.totalorder %s85, %s86
      %p95 = scmp.eq.s32.totalorder %s28, 0
      %p96 = por %p94, %p95
      %p97 = scmp.ne.s32.totalorder %s85, %s86
      %p98 = scmp.eq.s32.totalorder %s29, 1
      %p99 = por %p97, %p98
      %p101 = scmp.ne.s32.totalorder %s86, %s100
      %p102 = scmp.eq.s32.totalorder %s29, 0
      %p103 = por %p101, %p102
      %s105 = sadd.s32 %s104, 1
      %p108 = scmp.eq.s32.totalorder %s23, 1
      %p109 = scmp.ne.s32.totalorder %s104, %s106
      %p110 = scmp.eq.s32.totalorder %s23, 0
      %p111 = por %p109, %p110
      %p112 = scmp.ne.s32.totalorder %s104, %s106
      %p113 = scmp.eq.s32.totalorder %s28, 1
      %p114 = por %p112, %p113
      %p115 = scmp.ne.s32.totalorder %s106, %s107
      %p116 = scmp.eq.s32.totalorder %s28, 0
      %p117 = por %p115, %p116
      %p118 = scmp.ne.s32.totalorder %s106, %s107
      %p119 = scmp.eq.s32.totalorder %s29, 1
      %p120 = por %p118, %p119
      %p122 = scmp.ne.s32.totalorder %s107, %s121
      %p123 = scmp.eq.s32.totalorder %s29, 0
      %p124 = por %p122, %p123
      %s126 = sadd.s32 %s125, 1
      %p129 = scmp.eq.s32.totalorder %s23, 1
      %p130 = scmp.ne.s32.totalorder %s125, %s127
      %p131 = scmp.eq.s32.totalorder %s23, 0
      %p132 = por %p130, %p131
      %p133 = scmp.ne.s32.totalorder %s125, %s127
      %p134 = scmp.eq.s32.totalorder %s28, 1
      %p135 = por %p133, %p134
      %p136 = scmp.ne.s32.totalorder %s127, %s128
      %p137 = scmp.eq.s32.totalorder %s28, 0
      %p138 = por %p136, %p137
      %p139 = scmp.ne.s32.totalorder %s127, %s128
      %p140 = scmp.eq.s32.totalorder %s29, 1
      %p141 = por %p139, %p140
      %p143 = scmp.ne.s32.totalorder %s128, %s142
      %p144 = scmp.eq.s32.totalorder %s29, 0
      %p145 = por %p143, %p144
      %s147 = sadd.s32 %s146, 1
      %p150 = scmp.eq.s32.totalorder %s23, 1
      %p151 = scmp.ne.s32.totalorder %s146, %s148
      %p152 = scmp.eq.s32.totalorder %s23, 0
      %p153 = por %p151, %p152
      %p154 = scmp.ne.s32.totalorder %s146, %s148
      %p155 = scmp.eq.s32.totalorder %s28, 1
      %p156 = por %p154, %p155
      %p157 = scmp.ne.s32.totalorder %s148, %s149
      %p158 = scmp.eq.s32.totalorder %s28, 0
      %p159 = por %p157, %p158
      %p160 = scmp.ne.s32.totalorder %s148, %s149
      %p161 = scmp.eq.s32.totalorder %s29, 1
      %p162 = por %p160, %p161
      %p164 = scmp.ne.s32.totalorder %s149, %s163
      %p165 = scmp.eq.s32.totalorder %s29, 0
      %p166 = por %p164, %p165
      %s168 = sadd.s32 %s167, 1
      %p171 = scmp.eq.s32.totalorder %s23, 1
      %p172 = scmp.ne.s32.totalorder %s167, %s169
      %p173 = scmp.eq.s32.totalorder %s23, 0
      %p174 = por %p172, %p173
      %p175 = scmp.ne.s32.totalorder %s167, %s169
      %p176 = scmp.eq.s32.totalorder %s28, 1
      %p177 = por %p175, %p176
      %p178 = scmp.ne.s32.totalorder %s169, %s170
      %p179 = scmp.eq.s32.totalorder %s28, 0
      %p180 = por %p178, %p179
      %p181 = scmp.ne.s32.totalorder %s169, %s170
      %p182 = scmp.eq.s32.totalorder %s29, 1
      %p183 = por %p181, %p182
      %p185 = scmp.ne.s32.totalorder %s170, %s184
      %p186 = scmp.eq.s32.totalorder %s29, 0
      %p187 = por %p185, %p186
      %s188 = ssub.s32 %s23, %s30
      %p189 = scmp.eq.s32.totalorder %s188, 0
      %s191 = sadd.s32 %s190, 1
      %s192 = scalar_select %p189, %s190, %s191
      %p195 = pneg %p189
      %p196 = scmp.eq.s32.totalorder %s23, 1
      %p197 = por %p195, %p196
      %p198 = scmp.ne.s32.totalorder %s190, %s193
      %p199 = scmp.eq.s32.totalorder %s23, 0
      %p200 = por %p198, %p199
      %p201 = scmp.ne.s32.totalorder %s190, %s193
      %p202 = scmp.eq.s32.totalorder %s28, 1
      %p203 = por %p201, %p202
      %p204 = scmp.ne.s32.totalorder %s193, %s194
      %p205 = scmp.eq.s32.totalorder %s28, 0
      %p206 = por %p204, %p205
      %p207 = scmp.ne.s32.totalorder %s193, %s194
      %p208 = scmp.eq.s32.totalorder %s29, 1
      %p209 = por %p207, %p208
      %p211 = scmp.ne.s32.totalorder %s194, %s210
      %p212 = scmp.eq.s32.totalorder %s29, 0
      %p213 = por %p211, %p212
      %p214 = scmp.le.s32.totalorder 1, %s23
      %p215 = scmp.lt.s32.totalorder %s23, 3
      %p216 = pnand %p214, %p215
      %p217 = pneg %p216
      // Predicated region
      $region9: #{tpu_custom_call.1} parent=5 // pred_check
        _
      $region10: #{tpu_custom_call.1} parent=5 // pred_check_branch
        %219 = sbr.rel (%p216) target = $region12
      $region11: #{tpu_custom_call.1} parent=5 // pred_region
        %s220 = ssub.s32 %s23, 1
        // Predicated region
        $region13: #{tpu_custom_call.1} parent=11 // pred_check
          %p221 = pneg %p96
        $region14: #{tpu_custom_call.1} parent=11 // pred_check_branch
          %223 = sbr.rel (%p221) target = $region16
        $region15: #{tpu_custom_call.1} parent=11 // pred_region
          %s225 = ssub.s32 256, 256
          %226 = vsyncadd [#allocation6], %s225
          %s227 = sshll.u32 [#allocation7], 4
          %s228 = int_to_ptr.vmem [resolvable:$true] %s227
          %233 = dma.hbm_to_vmem [thread:$0]  %s2, 256, %s228, [#allocation6], 64, 64, 4
        $region16: #{tpu_custom_call.1} parent=11 // pred_fallthru
          _
        // Predicated region
        $region17: #{tpu_custom_call.1} parent=11 // pred_check
          %p234 = pneg %p117
        $region18: #{tpu_custom_call.1} parent=11 // pred_check_branch
          %236 = sbr.rel (%p234) target = $region20
        $region19: #{tpu_custom_call.1} parent=11 // pred_region
          %s238 = ssub.s32 256, 256
          %239 = vsyncadd [#allocation9], %s238
          %s240 = sshll.u32 [#allocation8], 4
          %s241 = int_to_ptr.vmem [resolvable:$true] %s240
          %246 = dma.hbm_to_vmem [thread:$0]  %s3, 256, %s241, [#allocation9], 64, 64, 4
        $region20: #{tpu_custom_call.1} parent=11 // pred_fallthru
          _
        // Predicated region
        $region21: #{tpu_custom_call.1} parent=11 // pred_check
          %p247 = pneg %p138
        $region22: #{tpu_custom_call.1} parent=11 // pred_check_branch
          %249 = sbr.rel (%p247) target = $region24
        $region23: #{tpu_custom_call.1} parent=11 // pred_region
          %s251 = ssub.s32 256, 256
          %252 = vsyncadd [#allocation9], %s251
          %s253 = sshll.u32 [#allocation10], 4
          %s254 = int_to_ptr.vmem [resolvable:$true] %s253
          %259 = dma.hbm_to_vmem [thread:$0]  %s4, 256, %s254, [#allocation9], 64, 64, 4
        $region24: #{tpu_custom_call.1} parent=11 // pred_fallthru
          _
        // Predicated region
        $region25: #{tpu_custom_call.1} parent=11 // pred_check
          %p260 = pneg %p159
        $region26: #{tpu_custom_call.1} parent=11 // pred_check_branch
          %262 = sbr.rel (%p260) target = $region28
        $region27: #{tpu_custom_call.1} parent=11 // pred_region
          _
        $region28: #{tpu_custom_call.1} parent=11 // pred_fallthru
          _
        // Predicated region
        $region29: #{tpu_custom_call.1} parent=11 // pred_check
          %p263 = pneg %p180
        $region30: #{tpu_custom_call.1} parent=11 // pred_check_branch
          %265 = sbr.rel (%p263) target = $region32
        $region31: #{tpu_custom_call.1} parent=11 // pred_region
          _
        $region32: #{tpu_custom_call.1} parent=11 // pred_fallthru
          _
      $region12: #{tpu_custom_call.1} parent=5 // pred_fallthru
        _
      %p266 = scmp.lt.s32.totalorder %s23, 2
      // Predicated region
      $region33: #{tpu_custom_call.1} parent=5 // pred_check
        %p267 = pneg %p266
      $region34: #{tpu_custom_call.1} parent=5 // pred_check_branch
        %269 = sbr.rel (%p267) target = $region36
      $region35: #{tpu_custom_call.1} parent=5 // pred_region
        // Predicated region
        $region37: #{tpu_custom_call.1} parent=35 // pred_check
          %p270 = pneg %p43
        $region38: #{tpu_custom_call.1} parent=35 // pred_check_branch
          %272 = sbr.rel (%p270) target = $region40
        $region39: #{tpu_custom_call.1} parent=35 // pred_region
          %s273 = sand.u32 %s33, 1
          %s274 = scalar_lea.sflag [#allocation3], %s273
          %s275 = sand.u32 %s33, 1
          %s276 = smul.addr %s275, 8
          %s277 = scalar_lea.vmem [#allocation2], %s276
          %s279 = ssub.s32 128, 128
          %280 = vsyncadd %s274, %s279
          %s281 = smul.addr %s23, 128
          %s282 = scalar_lea.hbm %s0, %s281
          %s284 = sshll.u32 %s277, 4
          %s285 = int_to_ptr.vmem [resolvable:$true] %s284
          %287 = dma.hbm_to_vmem [thread:$0]  %s282, 128, %s285, %s274
        $region40: #{tpu_custom_call.1} parent=35 // pred_fallthru
          _
        // Predicated region
        $region41: #{tpu_custom_call.1} parent=35 // pred_check
          %p288 = pneg %p69
        $region42: #{tpu_custom_call.1} parent=35 // pred_check_branch
          %290 = sbr.rel (%p288) target = $region44
        $region43: #{tpu_custom_call.1} parent=35 // pred_region
          %s291 = sand.u32 %s23, 1
          %s292 = scalar_lea.sflag [#allocation6], %s291
          %s293 = sand.u32 %s59, 1
          %s294 = smul.addr %s293, 8
          %s295 = scalar_lea.vmem [#allocation5], %s294
          %s297 = ssub.s32 128, 128
          %298 = vsyncadd %s292, %s297
          %s299 = smul.addr %s23, 128
          %s300 = scalar_lea.hbm %s1, %s299
          %s302 = sshll.u32 %s295, 4
          %s303 = int_to_ptr.vmem [resolvable:$true] %s302
          %305 = dma.hbm_to_vmem [thread:$0]  %s300, 128, %s303, %s292
        $region44: #{tpu_custom_call.1} parent=35 // pred_fallthru
          _
      $region36: #{tpu_custom_call.1} parent=5 // pred_fallthru
        _
      %p306 = scmp.le.s32.totalorder 1, %s23
      %p307 = scmp.lt.s32.totalorder %s23, 3
      %p308 = pnand %p306, %p307
      %p309 = pneg %p308
      // Predicated region
      $region45: #{tpu_custom_call.1} parent=5 // pred_check
        _
      $region46: #{tpu_custom_call.1} parent=5 // pred_check_branch
        %311 = sbr.rel (%p308) target = $region48
      $region47: #{tpu_custom_call.1} parent=5 // pred_region
        %s312 = ssub.s32 %s23, 1
        %s313 = sand.u32 %s36, 1
        %s314 = scalar_lea.sflag [#allocation3], %s313
        %s315 = sand.u32 %s36, 1
        %s316 = smul.addr %s315, 8
        %s317 = scalar_lea.vmem [#allocation2], %s316
        // Predicated region
        $region49: #{tpu_custom_call.1} parent=47 // pred_check
          %p318 = pneg %p49
        $region50: #{tpu_custom_call.1} parent=47 // pred_check_branch
          %320 = sbr.rel (%p318) target = $region52
        $region51: #{tpu_custom_call.1} parent=47 // pred_region
          %321 = dma.done %s314, 128
        $region52: #{tpu_custom_call.1} parent=47 // pred_fallthru
          _
        %s322 = sand.u32 %s28, 1
        %s323 = scalar_lea.sflag [#allocation6], %s322
        %s324 = sand.u32 %s62, 1
        %s325 = smul.addr %s324, 8
        %s326 = scalar_lea.vmem [#allocation5], %s325
        // Predicated region
        $region53: #{tpu_custom_call.1} parent=47 // pred_check
          %p327 = pneg %p75
        $region54: #{tpu_custom_call.1} parent=47 // pred_check_branch
          %329 = sbr.rel (%p327) target = $region56
        $region55: #{tpu_custom_call.1} parent=47 // pred_region
          %330 = dma.done %s323, 128
        $region56: #{tpu_custom_call.1} parent=47 // pred_fallthru
          _
        // Predicated region
        $region57: #{tpu_custom_call.1} parent=47 // pred_check
          %p331 = pneg %p96
        $region58: #{tpu_custom_call.1} parent=47 // pred_check_branch
          %333 = sbr.rel (%p331) target = $region60
        $region59: #{tpu_custom_call.1} parent=47 // pred_region
          %334 = dma.done [#allocation6], 256
        $region60: #{tpu_custom_call.1} parent=47 // pred_fallthru
          _
        // Predicated region
        $region61: #{tpu_custom_call.1} parent=47 // pred_check
          %p335 = pneg %p117
        $region62: #{tpu_custom_call.1} parent=47 // pred_check_branch
          %337 = sbr.rel (%p335) target = $region64
        $region63: #{tpu_custom_call.1} parent=47 // pred_region
          %338 = dma.done [#allocation9], 256
        $region64: #{tpu_custom_call.1} parent=47 // pred_fallthru
          _
        // Predicated region
        $region65: #{tpu_custom_call.1} parent=47 // pred_check
          %p339 = pneg %p138
        $region66: #{tpu_custom_call.1} parent=47 // pred_check_branch
          %341 = sbr.rel (%p339) target = $region68
        $region67: #{tpu_custom_call.1} parent=47 // pred_region
          %342 = dma.done [#allocation9], 256
        $region68: #{tpu_custom_call.1} parent=47 // pred_fallthru
          _
        %s343 = sand.u32 %s36, 1
        %s344 = scalar_lea.sflag [#allocation3], %s343
        %s345 = sand.u32 %s36, 1
        %s346 = smul.addr %s345, 8
        %s347 = scalar_lea.vmem [#allocation2], %s346
        %p348 = pneg %p49
        %p349 = pneg %p46
        %s350 = sand.u32 %s28, 1
        %s351 = scalar_lea.sflag [#allocation6], %s350
        %s352 = sand.u32 %s62, 1
        %s353 = smul.addr %s352, 8
        %s354 = scalar_lea.vmem [#allocation5], %s353
        %p355 = pneg %p75
        %p356 = pneg %p72
        %p357 = pneg %p96
        %p358 = pneg %p93
        %p359 = pneg %p117
        %p360 = pneg %p114
        %p361 = pneg %p138
        %p362 = pneg %p135
        %p363 = pneg %p159
        %p364 = pneg %p156
        %p365 = pneg %p180
        %p366 = pneg %p177
        %p367 = pneg %p206
        %p368 = pneg %p203
        %s369 = sand.u32 %s193, 1
        %s370 = scalar_lea.sflag [#allocation4], %s369
        %s371 = sand.u32 %s193, 1
        %s372 = smul.addr %s371, 8
        %s373 = scalar_lea.vmem [#allocation11], %s372
        %v375 = vld [vmem:[%s317] sm:$0xff]
        %v376 = vld [vmem:[%s326] sm:$0xff]
        %v377 = vpack.c.bf16 %v375, %v375
        %v378 = vld [vmem:[#allocation7] sm:$0xf]
        %v379 = vld [vmem:[#allocation7 + $0x4] sm:$0xf]
        %v380 = vld [vmem:[#allocation7 + $0x8] sm:$0xf]
        %v381 = vld [vmem:[#allocation7 + $0xc] sm:$0xf]
        %v386 = vunpack.c.l.b16 %v378
        %v387 = vunpack.c.l.b16 %v379
        %v388 = vunpack.c.l.b16 %v380
        %v389 = vunpack.c.l.b16 %v381
        %v390 = vpack.c.b16 %v387, %v386
        %v391 = vpack.c.b16 %v389, %v388
        %vm394 = vcmask 261120
        %v396 = vsel %vm394, %v377, 0
        %398 = vmatprep.subr.bf16.mxu0 0
        %399 = vmatpush1.bf16.msra.mxu0 %v390
        %400 = vmatprep.subr.bf16.mxu0 0
        %401 = vmatpush1.bf16.msra.mxu0 %v391
        %402 = vmatprep.subr.bf16.mxu0 0
        %403 = vmatpush1.bf16.msra.mxu0 0
        %404 = vmatprep.subr.bf16.mxu0 0
        %405 = vmatpush1.bf16.msra.mxu0 0
        %406 = vmatprep.subr.bf16.mxu0 0
        %407 = vmatpush1.bf16.msra.mxu0 0
        %408 = vmatprep.subr.bf16.mxu0 0
        %409 = vmatpush1.bf16.msra.mxu0 0
        %410 = vmatprep.subr.bf16.mxu0 0
        %411 = vmatpush1.bf16.msra.mxu0 0
        %412 = vmatprep.subr.bf16.mxu0 0
        %413 = vmatpush1.bf16.msra.mxu0 0
        %414 = vmatprep.subr.bf16.mxu0 0
        %415 = vmatpush1.bf16.msra.mxu0 0
        %416 = vmatprep.subr.bf16.mxu0 0
        %417 = vmatpush1.bf16.msra.mxu0 0
        %418 = vmatprep.subr.bf16.mxu0 0
        %419 = vmatpush1.bf16.msra.mxu0 0
        %420 = vmatprep.subr.bf16.mxu0 0
        %421 = vmatpush1.bf16.msra.mxu0 0
        %422 = vmatprep.subr.bf16.mxu0 0
        %423 = vmatpush1.bf16.msra.mxu0 0
        %424 = vmatprep.subr.bf16.mxu0 0
        %425 = vmatpush1.bf16.msra.mxu0 0
        %426 = vmatprep.subr.bf16.mxu0 0
        %427 = vmatpush1.bf16.msra.mxu0 0
        %428 = vmatprep.subr.bf16.mxu0 0
        %429 = vmatpush1.bf16.msra.mxu0 0
        %430 = vmatprep.mubr.bf16.mxu0 0
        %431 = vmatmul.mubr.bf16.gmra.mrb[0].mxu0 %v396
        %v432 = vpop.f32.mrb[0].mxu0
        %v433 = vadd.f32 0.0, %v432
        %v434 = vpop.f32.mrb[0].mxu0
        %v435 = vpop.f32.mrb[0].mxu0
        %v436 = vpop.f32.mrb[0].mxu0
        %437 = vdwg.mxu0
        %v438 = vpack.c.bf16 %v376, %v376
        %v439 = vld [vmem:[#allocation8] sm:$0xf]
        %v440 = vld [vmem:[#allocation8 + $0x4] sm:$0xf]
        %v441 = vld [vmem:[#allocation8 + $0x8] sm:$0xf]
        %v442 = vld [vmem:[#allocation8 + $0xc] sm:$0xf]
        %v447 = vunpack.c.l.b16 %v439
        %v448 = vunpack.c.l.b16 %v440
        %v449 = vunpack.c.l.b16 %v441
        %v450 = vunpack.c.l.b16 %v442
        %v451 = vpack.c.b16 %v448, %v447
        %v452 = vpack.c.b16 %v450, %v449
        %v456 = vsel %vm394, %v438, 0
        %458 = vmatprep.subr.bf16.mxu0 0
        %459 = vmatpush1.bf16.msra.mxu0 %v451
        %460 = vmatprep.subr.bf16.mxu0 0
        %461 = vmatpush1.bf16.msra.mxu0 %v452
        %462 = vmatprep.subr.bf16.mxu0 0
        %463 = vmatpush1.bf16.msra.mxu0 0
        %464 = vmatprep.subr.bf16.mxu0 0
        %465 = vmatpush1.bf16.msra.mxu0 0
        %466 = vmatprep.subr.bf16.mxu0 0
        %467 = vmatpush1.bf16.msra.mxu0 0
        %468 = vmatprep.subr.bf16.mxu0 0
        %469 = vmatpush1.bf16.msra.mxu0 0
        %470 = vmatprep.subr.bf16.mxu0 0
        %471 = vmatpush1.bf16.msra.mxu0 0
        %472 = vmatprep.subr.bf16.mxu0 0
        %473 = vmatpush1.bf16.msra.mxu0 0
        %474 = vmatprep.subr.bf16.mxu0 0
        %475 = vmatpush1.bf16.msra.mxu0 0
        %476 = vmatprep.subr.bf16.mxu0 0
        %477 = vmatpush1.bf16.msra.mxu0 0
        %478 = vmatprep.subr.bf16.mxu0 0
        %479 = vmatpush1.bf16.msra.mxu0 0
        %480 = vmatprep.subr.bf16.mxu0 0
        %481 = vmatpush1.bf16.msra.mxu0 0
        %482 = vmatprep.subr.bf16.mxu0 0
        %483 = vmatpush1.bf16.msra.mxu0 0
        %484 = vmatprep.subr.bf16.mxu0 0
        %485 = vmatpush1.bf16.msra.mxu0 0
        %486 = vmatprep.subr.bf16.mxu0 0
        %487 = vmatpush1.bf16.msra.mxu0 0
        %488 = vmatprep.subr.bf16.mxu0 0
        %489 = vmatpush1.bf16.msra.mxu0 0
        %490 = vmatprep.mubr.bf16.mxu0 0
        %491 = vmatmul.mubr.bf16.gmra.mrb[0].mxu0 %v456
        %v492 = vpop.f32.mrb[0].mxu0
        %v493 = vadd.f32 0.0, %v492
        %v494 = vpop.f32.mrb[0].mxu0
        %v495 = vpop.f32.mrb[0].mxu0
        %v496 = vpop.f32.mrb[0].mxu0
        %497 = vdwg.mxu0
        %v498 = vadd.f32 %v433, %v493
        %v499 = vxor.u32 %v498, 2147483648
        %v500 = vmul.f32 %v499, 1.442695
        %v501 = vpow.pop %v500
        %v502 = vadd.f32 %v501, 1.0
        %v503 = vrcp.pop %v502
        %v504 = vmul.f32 1.0, %v503
        %506 = vrot.lane.b32.xlu0 %v493, 64
        %v507 = vpop.permute.xlu0 %506
        %v509 = vmul.f32 %v504, %v507
        %511 = vrot.lane.b32.xlu0 %v509, 64
        %v512 = vpop.permute.xlu0 %511
        %v514 = vadd.f32 %v433, %v512
        %v515 = vtanh.pop %v514
        %v516 = vsub.f32 1.0, %v504
        %518 = vrot.lane.b32.xlu0 %v515, 96
        %v519 = vpop.permute.xlu0 %518
        %v521 = vmul.f32 %v516, %v519
        %523 = vrot.lane.b32.xlu0 %v376, 32
        %v524 = vpop.permute.xlu0 %523
        %v526 = vmul.f32 %v504, %v524
        %v527 = vadd.f32 %v521, %v526
        %529 = vrot.lane.b32.xlu0 %v433, 64
        %v530 = vpop.permute.xlu0 %529
        %v532 = vadd.f32 %v527, %v530
        %v533 = vmax.f32 %v532, 0.0
        %v534 = vpack.c.bf16 %v533, %v533
        %v535 = vld [vmem:[#allocation10] sm:$0xf]
        %v536 = vld [vmem:[#allocation10 + $0x4] sm:$0xf]
        %v537 = vld [vmem:[#allocation10 + $0x8] sm:$0xf]
        %v538 = vld [vmem:[#allocation10 + $0xc] sm:$0xf]
        %540 = vrot.lane.b32.xlu0 %v534, 96
        %v541 = vpop.permute.xlu0 %540
        %v546 = vunpack.c.l.b16 %v535
        %v547 = vunpack.c.l.b16 %v536
        %v548 = vunpack.c.l.b16 %v537
        %v549 = vunpack.c.l.b16 %v538
        %v550 = vpack.c.b16 %v547, %v546
        %v551 = vpack.c.b16 %v549, %v548
        %v555 = vsel %vm394, %v541, 0
        %557 = vmatprep.subr.bf16.mxu0 0
        %558 = vmatpush1.bf16.msra.mxu0 %v550
        %559 = vmatprep.subr.bf16.mxu0 0
        %560 = vmatpush1.bf16.msra.mxu0 %v551
        %561 = vmatprep.subr.bf16.mxu0 0
        %562 = vmatpush1.bf16.msra.mxu0 0
        %563 = vmatprep.subr.bf16.mxu0 0
        %564 = vmatpush1.bf16.msra.mxu0 0
        %565 = vmatprep.subr.bf16.mxu0 0
        %566 = vmatpush1.bf16.msra.mxu0 0
        %567 = vmatprep.subr.bf16.mxu0 0
        %568 = vmatpush1.bf16.msra.mxu0 0
        %569 = vmatprep.subr.bf16.mxu0 0
        %570 = vmatpush1.bf16.msra.mxu0 0
        %571 = vmatprep.subr.bf16.mxu0 0
        %572 = vmatpush1.bf16.msra.mxu0 0
        %573 = vmatprep.subr.bf16.mxu0 0
        %574 = vmatpush1.bf16.msra.mxu0 0
        %575 = vmatprep.subr.bf16.mxu0 0
        %576 = vmatpush1.bf16.msra.mxu0 0
        %577 = vmatprep.subr.bf16.mxu0 0
        %578 = vmatpush1.bf16.msra.mxu0 0
        %579 = vmatprep.subr.bf16.mxu0 0
        %580 = vmatpush1.bf16.msra.mxu0 0
        %581 = vmatprep.subr.bf16.mxu0 0
        %582 = vmatpush1.bf16.msra.mxu0 0
        %583 = vmatprep.subr.bf16.mxu0 0
        %584 = vmatpush1.bf16.msra.mxu0 0
        %585 = vmatprep.subr.bf16.mxu0 0
        %586 = vmatpush1.bf16.msra.mxu0 0
        %587 = vmatprep.subr.bf16.mxu0 0
        %588 = vmatpush1.bf16.msra.mxu0 0
        %589 = vmatprep.mubr.bf16.mxu0 0
        %590 = vmatmul.mubr.bf16.gmra.mrb[0].mxu0 %v555
        %v591 = vpop.f32.mrb[0].mxu0
        %v592 = vadd.f32 0.0, %v591
        %v593 = vpop.f32.mrb[0].mxu0
        %v594 = vpop.f32.mrb[0].mxu0
        %v595 = vpop.f32.mrb[0].mxu0
        %596 = vdwg.mxu0
        %598 = vrot.lane.b32.xlu0 %v592, 120
        %v599 = vpop.permute.xlu0 %598
        %v601 = vmax.f32 %v592, %v599
        %602 = vrot.lane.b32.xlu0 %v592, 112
        %v603 = vpop.permute.xlu0 %602
        %v605 = vmax.f32 %v601, %v603
        %606 = vrot.lane.b32.xlu0 %v592, 104
        %v607 = vpop.permute.xlu0 %606
        %v609 = vmax.f32 %v605, %v607
        %v610 = vpack.c.bf16 %v609, %v609
        %v611 = vld [vmem:[%s5] sm:$0xf]
        %v612 = vld [vmem:[%s6] sm:$0x1]
        %v614 = vlaneseq
        %v615 = vshrl.u32 %v614, 7
        %v616 = vsub.s32 0, %v615
        %v617 = vrot.slane %v612, %v616
        %vm619 = vcmask 64512
        %v621 = vsel %vm619, %v610, 0
        %vm623 = vcmask 1043456
        %v625 = vsel %vm623, %v611, 0
        %627 = vmatprep.subr.bf16.mxu0 0
        %628 = vmatpush1.bf16.msra.mxu0 %v625
        %629 = vmatprep.subr.bf16.mxu0 0
        %630 = vmatpush1.bf16.msra.mxu0 0
        %631 = vmatprep.subr.bf16.mxu0 0
        %632 = vmatpush1.bf16.msra.mxu0 0
        %633 = vmatprep.subr.bf16.mxu0 0
        %634 = vmatpush1.bf16.msra.mxu0 0
        %635 = vmatprep.subr.bf16.mxu0 0
        %636 = vmatpush1.bf16.msra.mxu0 0
        %637 = vmatprep.subr.bf16.mxu0 0
        %638 = vmatpush1.bf16.msra.mxu0 0
        %639 = vmatprep.subr.bf16.mxu0 0
        %640 = vmatpush1.bf16.msra.mxu0 0
        %641 = vmatprep.subr.bf16.mxu0 0
        %642 = vmatpush1.bf16.msra.mxu0 0
        %643 = vmatprep.subr.bf16.mxu0 0
        %644 = vmatpush1.bf16.msra.mxu0 0
        %645 = vmatprep.subr.bf16.mxu0 0
        %646 = vmatpush1.bf16.msra.mxu0 0
        %647 = vmatprep.subr.bf16.mxu0 0
        %648 = vmatpush1.bf16.msra.mxu0 0
        %649 = vmatprep.subr.bf16.mxu0 0
        %650 = vmatpush1.bf16.msra.mxu0 0
        %651 = vmatprep.subr.bf16.mxu0 0
        %652 = vmatpush1.bf16.msra.mxu0 0
        %653 = vmatprep.subr.bf16.mxu0 0
        %654 = vmatpush1.bf16.msra.mxu0 0
        %655 = vmatprep.subr.bf16.mxu0 0
        %656 = vmatpush1.bf16.msra.mxu0 0
        %657 = vmatprep.subr.bf16.mxu0 0
        %658 = vmatpush1.bf16.msra.mxu0 0
        %659 = vmatprep.mubr.bf16.mxu0 0
        %660 = vmatmul.mubr.bf16.gmra.mrb[0].mxu0 %v621
        %v661 = vpop.f32.mrb[0].mxu0
        %v662 = vadd.f32 %v617, %v661
        %v663 = vpop.f32.mrb[0].mxu0
        %v664 = vpop.f32.mrb[0].mxu0
        %v665 = vpop.f32.mrb[0].mxu0
        %666 = vdwg.mxu0
        %v667 = vtanh.pop %v662
        %668 = vst.msk [vmem:[%s373] sm:$0xff] %vm394, %v667
        %s669 = sand.u32 %s193, 1
        %s670 = scalar_lea.sflag [#allocation4], %s669
        %s671 = sand.u32 %s193, 1
        %s672 = smul.addr %s671, 8
        %s673 = scalar_lea.vmem [#allocation11], %s672
        // Predicated region
        $region69: #{tpu_custom_call.1} parent=47 // pred_check
          %p674 = pneg %p203
        $region70: #{tpu_custom_call.1} parent=47 // pred_check_branch
          %676 = sbr.rel (%p674) target = $region72
        $region71: #{tpu_custom_call.1} parent=47 // pred_region
          %s678 = ssub.s32 128, 128
          %679 = vsyncadd %s670, %s678
          %s680 = smul.addr %s28, 128
          %s681 = scalar_lea.hbm %s7, %s680
          %s683 = sshll.u32 %s673, 4
          %s684 = int_to_ptr.vmem [resolvable:$true] %s683
          %686 = dma.vmem_to_hbm [thread:$0]  %s684, 128, %s681, %s670
        $region72: #{tpu_custom_call.1} parent=47 // pred_fallthru
          _
      $region48: #{tpu_custom_call.1} parent=5 // pred_fallthru
        _
      %p687 = scmp.le.s32.totalorder 2, %s23
      // Predicated region
      $region73: #{tpu_custom_call.1} parent=5 // pred_check
        %p688 = pneg %p687
      $region74: #{tpu_custom_call.1} parent=5 // pred_check_branch
        %690 = sbr.rel (%p688) target = $region76
      $region75: #{tpu_custom_call.1} parent=5 // pred_region
        %s691 = ssub.s32 %s23, 2
        // Predicated region
        $region77: #{tpu_custom_call.1} parent=75 // pred_check
          %p692 = pneg %p209
        $region78: #{tpu_custom_call.1} parent=75 // pred_check_branch
          %694 = sbr.rel (%p692) target = $region80
        $region79: #{tpu_custom_call.1} parent=75 // pred_region
          %s695 = sand.u32 %s194, 1
          %s696 = scalar_lea.sflag [#allocation4], %s695
          %s697 = sand.u32 %s194, 1
          %s698 = smul.addr %s697, 8
          %s699 = scalar_lea.vmem [#allocation11], %s698
          %700 = dma.done %s696, 128
        $region80: #{tpu_custom_call.1} parent=75 // pred_fallthru
          _
      $region76: #{tpu_custom_call.1} parent=5 // pred_fallthru
        _
    $region6: #{tpu_custom_call.1} parent=1 // loop_footer
      %s27 = sadd.s32 1, %s23
    $region7: #{tpu_custom_call.1} parent=1 // loop_footer_branch
      %22 = sbr.rel target = $region3
    $region8: #{tpu_custom_call.1} parent=1 // loop_exit
      _
    %701 = vsyncpa [#allocation3], 1
    %s702 = scalar_lea.sflag [#allocation3], 1
    %703 = vsyncpa %s702, 1
    %704 = vsyncpa [#allocation6], 1
    %s705 = scalar_lea.sflag [#allocation6], 1
    %706 = vsyncpa %s705, 1
    %707 = vsyncpa [#allocation9], 1
    %708 = vsyncpa [#allocation4], 1
    %s709 = scalar_lea.sflag [#allocation4], 1
    %710 = vsyncpa %s709, 1

</llo_original>
